<compile_context>
chip_gen: v5e
topology: v5e:2x2
jax: 0.10.0
libtpu: 0.0.40
codegen_flags: <defaults>
</compile_context>

<pallas_src>
import jax
import jax.numpy as jnp
from jax.experimental import pallas as pl
from jax.experimental.pallas import tpu as pltpu

KWARGS_DQN = {'num_col': 6, 'num_row': 5, 'num_rune': 3, 'max_move': 1000,
              'num_action': 9, 'mode': 'fixed', 'extra_obs': 3}
N_ACTIONS = KWARGS_DQN['num_action']                                               # 9
N_STATES = KWARGS_DQN['num_col'] * KWARGS_DQN['num_row'] + KWARGS_DQN['extra_obs'] # 33
HIDDEN = 50

# Padded (TPU-friendly) shapes.
N_STATES_PAD = 40    # 33 rounded up to a multiple of 8 (sublane granularity)
HIDDEN_PAD = 128     # 50 rounded up to the 128-lane width


def _round_up(n, m):
    return (n + m - 1) // m * m


def _mlp_kernel(x_ref, w1_ref, b1_ref, w2_ref, b2_ref, o_ref):
    # Two MXU matmuls + VPU bias/ReLU, all tiles resident in VMEM.
    x = x_ref[...]                                                      # (TB, 40)
    h = jnp.dot(x, w1_ref[...], preferred_element_type=jnp.float32)     # (TB, 128)
    h = jnp.maximum(h + b1_ref[...], 0.0)                               # bias + ReLU (f32)
    y = jnp.dot(h, w2_ref[...], preferred_element_type=jnp.float32)     # (TB, 9)
    o_ref[...] = (y + b2_ref[...]).astype(o_ref.dtype)


def net_forward(x, w1, b1, w2, b2, *, tile_b=512):
    """Forward pass of Net.

    x : (B, N_STATES) f32
    w1: (N_STATES, HIDDEN) f32   (transpose of PyTorch's (out, in) layout)
    b1: (HIDDEN,)          f32
    w2: (HIDDEN, N_ACTIONS) f32
    b2: (N_ACTIONS,)        f32
    returns (B, N_ACTIONS) f32
    """
    B, n_states = x.shape
    assert n_states == N_STATES

    # --- parameter padding (tiny, done once outside the kernel) ---
    w1p = jnp.zeros((N_STATES_PAD, HIDDEN_PAD), jnp.float32).at[:N_STATES, :HIDDEN].set(w1)
    b1p = jnp.zeros((1, HIDDEN_PAD), jnp.float32).at[0, :HIDDEN].set(b1)
    w2p = jnp.zeros((HIDDEN_PAD, N_ACTIONS), jnp.float32).at[:HIDDEN, :].set(w2)
    b2p = b2.reshape(1, N_ACTIONS).astype(jnp.float32)

    # --- batch tiling: pad B up to a multiple of the tile ---
    tb = min(tile_b, _round_up(B, 8))         # small batches: one 8-aligned tile
    b_pad = _round_up(B, tb)
    xp = jnp.zeros((b_pad, N_STATES_PAD), jnp.float32).at[:B, :N_STATES].set(x)

    grid = (b_pad // tb,)

    flops = 2 * b_pad * (N_STATES_PAD * HIDDEN_PAD + HIDDEN_PAD * N_ACTIONS)
    bytes_accessed = 4 * (
        b_pad * N_STATES_PAD                      # x read
        + N_STATES_PAD * HIDDEN_PAD + HIDDEN_PAD  # w1, b1
        + HIDDEN_PAD * N_ACTIONS + N_ACTIONS      # w2, b2
        + b_pad * N_ACTIONS                       # output write
    )

    out = pl.pallas_call(
        _mlp_kernel,
        out_shape=jax.ShapeDtypeStruct((b_pad, N_ACTIONS), jnp.float32),
        grid_spec=pltpu.PrefetchScalarGridSpec(
            num_scalar_prefetch=0,
            grid=grid,
            in_specs=[
                # x streams per grid step
                pl.BlockSpec((tb, N_STATES_PAD), lambda i: (i, 0)),
                # weights / biases: constant index_map -> DMA'd once, VMEM-resident
                pl.BlockSpec((N_STATES_PAD, HIDDEN_PAD), lambda i: (0, 0)),
                pl.BlockSpec((1, HIDDEN_PAD), lambda i: (0, 0)),
                pl.BlockSpec((HIDDEN_PAD, N_ACTIONS), lambda i: (0, 0)),
                pl.BlockSpec((1, N_ACTIONS), lambda i: (0, 0)),
            ],
            out_specs=pl.BlockSpec((tb, N_ACTIONS), lambda i: (i, 0)),
        ),
        compiler_params=pltpu.CompilerParams(
            dimension_semantics=("parallel",),   # v7x: shard batch tiles over both TCs
        ),
        cost_estimate=pl.CostEstimate(
            flops=flops, transcendentals=0, bytes_accessed=bytes_accessed),
    )(xp, w1p, b1p, w2p, b2p)

    return out[:B]


def init_params(key):
    """Synthetic init mirroring the PyTorch module: weight ~ N(0, 0.1), bias = 0.
    PyTorch stores Linear weight as (out, in); we store the transpose (in, out)
    so the kernel computes x @ W + b directly."""
    k1, k2 = jax.random.split(key)
    w1 = (0.1 * jax.random.normal(k1, (N_STATES, HIDDEN))).astype(jnp.float32)
    b1 = jnp.zeros((HIDDEN,), jnp.float32)
    w2 = (0.1 * jax.random.normal(k2, (HIDDEN, N_ACTIONS))).astype(jnp.float32)
    b2 = jnp.zeros((N_ACTIONS,), jnp.float32)
    return w1, b1, w2, b2


if __name__ == "__main__":
    key = jax.random.PRNGKey(0)
    kx, kp = jax.random.split(key)
    B = 8
    x = jax.random.normal(kx, (B, N_STATES), dtype=jnp.float32)
    w1, b1, w2, b2 = init_params(kp)

    actions_value = net_forward(x, w1, b1, w2, b2)
    jax.block_until_ready(actions_value)

    # Cross-check against a pure-JAX reference of the same forward pass.
    ref = jnp.maximum(x @ w1 + b1, 0.0) @ w2 + b2
    assert actions_value.shape == (B, N_ACTIONS)
    assert jnp.allclose(actions_value, ref, atol=1e-5, rtol=1e-5)
    print("KERNEL_OK")
</pallas_src>

<mosaic_0001>
module attributes {stable_mosaic.version = 11 : i64} {
  func.func @_mlp_kernel(%arg0: i32, %arg1: memref<8x40xf32, #tpu.memory_space<vmem>>, %arg2: memref<40x128xf32, #tpu.memory_space<vmem>>, %arg3: memref<1x128xf32, #tpu.memory_space<vmem>>, %arg4: memref<128x9xf32, #tpu.memory_space<vmem>>, %arg5: memref<1x9xf32, #tpu.memory_space<vmem>>, %arg6: memref<8x9xf32, #tpu.memory_space<vmem>>) attributes {dimension_semantics = [#tpu.dimension_semantics<parallel>], iteration_bounds = array<i64: 1>, scalar_prefetch = 0 : i64, scratch_operands = 0 : i64, tpu.core_type = #tpu.core_type<tc>, window_params = [{transform_indices = @transform_0, window_bounds = array<i64: 8, 40>}, {pipeline_mode = #tpu.pipeline_mode<synchronous>, transform_indices = @transform_1, window_bounds = array<i64: 40, 128>}, {pipeline_mode = #tpu.pipeline_mode<synchronous>, transform_indices = @transform_2, window_bounds = array<i64: 1, 128>}, {pipeline_mode = #tpu.pipeline_mode<synchronous>, transform_indices = @transform_3, window_bounds = array<i64: 128, 9>}, {pipeline_mode = #tpu.pipeline_mode<synchronous>, transform_indices = @transform_4, window_bounds = array<i64: 1, 9>}, {transform_indices = @transform_5, window_bounds = array<i64: 8, 9>}]} {
    %c0 = arith.constant 0 : index
    %c0_0 = arith.constant 0 : index
    %0 = vector.load %arg1[%c0, %c0_0] : memref<8x40xf32, #tpu.memory_space<vmem>>, vector<8x40xf32>
    %c0_1 = arith.constant 0 : index
    %c0_2 = arith.constant 0 : index
    %1 = vector.load %arg2[%c0_1, %c0_2] : memref<40x128xf32, #tpu.memory_space<vmem>>, vector<40x128xf32>
    %cst = arith.constant dense<0.000000e+00> : vector<8x128xf32>
    %2 = tpu.matmul %0, %1, %cst {dimension_numbers = #tpu.dot_dimension_numbers<[1], [0], [0], [1], [0, 0, 1, 1], [], []>} : vector<8x40xf32>, vector<40x128xf32>, vector<8x128xf32> -> vector<8x128xf32>
    %c0_3 = arith.constant 0 : index
    %c0_4 = arith.constant 0 : index
    %3 = vector.load %arg3[%c0_3, %c0_4] : memref<1x128xf32, #tpu.memory_space<vmem>>, vector<1x128xf32>
    %4 = vector.broadcast %3 : vector<1x128xf32> to vector<8x128xf32>
    %5 = arith.addf %2, %4 : vector<8x128xf32>
    %cst_5 = arith.constant 0.000000e+00 : f32
    %6 = vector.broadcast %cst_5 : f32 to vector<8x128xf32>
    %7 = arith.maximumf %5, %6 : vector<8x128xf32>
    %c0_6 = arith.constant 0 : index
    %c0_7 = arith.constant 0 : index
    %8 = vector.load %arg4[%c0_6, %c0_7] : memref<128x9xf32, #tpu.memory_space<vmem>>, vector<128x9xf32>
    %cst_8 = arith.constant dense<0.000000e+00> : vector<8x9xf32>
    %9 = tpu.matmul %7, %8, %cst_8 {dimension_numbers = #tpu.dot_dimension_numbers<[1], [0], [0], [1], [0, 0, 1, 1], [], []>} : vector<8x128xf32>, vector<128x9xf32>, vector<8x9xf32> -> vector<8x9xf32>
    %c0_9 = arith.constant 0 : index
    %c0_10 = arith.constant 0 : index
    %10 = vector.load %arg5[%c0_9, %c0_10] : memref<1x9xf32, #tpu.memory_space<vmem>>, vector<1x9xf32>
    %11 = vector.broadcast %10 : vector<1x9xf32> to vector<8x9xf32>
    %12 = arith.addf %9, %11 : vector<8x9xf32>
    %c0_11 = arith.constant 0 : index
    %c0_12 = arith.constant 0 : index
    %13 = vector.load %arg6[%c0_11, %c0_12] : memref<8x9xf32, #tpu.memory_space<vmem>>, vector<8x9xf32>
    tpu.vector_store %arg6[%c0_11, %c0_12], %12 {strides = array<i32>} : memref<8x9xf32, #tpu.memory_space<vmem>>, vector<8x9xf32>,
    return
  }
  func.func @transform_0(%arg0: i32) -> (i32, i32) {
    %c0_i32 = arith.constant 0 : i32
    %c0_i32_0 = arith.constant 0 : i32
    return %arg0, %c0_i32 : i32, i32
  }
  func.func @transform_1(%arg0: i32) -> (i32, i32) {
    %c0_i32 = arith.constant 0 : i32
    %c0_i32_0 = arith.constant 0 : i32
    %c0_i32_1 = arith.constant 0 : i32
    return %c0_i32, %c0_i32_0 : i32, i32
  }
  func.func @transform_2(%arg0: i32) -> (i32, i32) {
    %c0_i32 = arith.constant 0 : i32
    %c0_i32_0 = arith.constant 0 : i32
    %c0_i32_1 = arith.constant 0 : i32
    return %c0_i32, %c0_i32_0 : i32, i32
  }
  func.func @transform_3(%arg0: i32) -> (i32, i32) {
    %c0_i32 = arith.constant 0 : i32
    %c0_i32_0 = arith.constant 0 : i32
    %c0_i32_1 = arith.constant 0 : i32
    return %c0_i32, %c0_i32_0 : i32, i32
  }
  func.func @transform_4(%arg0: i32) -> (i32, i32) {
    %c0_i32 = arith.constant 0 : i32
    %c0_i32_0 = arith.constant 0 : i32
    %c0_i32_1 = arith.constant 0 : i32
    return %c0_i32, %c0_i32_0 : i32, i32
  }
  func.func @transform_5(%arg0: i32) -> (i32, i32) {
    %c0_i32 = arith.constant 0 : i32
    %c0_i32_0 = arith.constant 0 : i32
    return %arg0, %c0_i32 : i32, i32
  }
}

</mosaic_0001>

<llo_original>
// kernel: tpu_custom_call.1
$region0: #{tpu_custom_call.1}
  #allocation0 [shape = 'u32[]', space=smem, size = 0x4, offset = 0x4, fixed_abs, tag = 'smem constant byte address 0x4 - core index']
  #allocation1 [shape = 'u32[72,128]{1,0:T(1,128)}', space=vmem, size = 0x9000, scoped, tag = 'internal scratch']
  %s0 = inlined_call_operand.vmem [shape: f32[8,40], index: 0, kind: input, shape index: {}]
  %s1 = inlined_call_operand.vmem [shape: f32[40,128], index: 1, kind: input, shape index: {}]
  %s2 = inlined_call_operand.vmem [shape: f32[1,128], index: 2, kind: input, shape index: {}]
  %s3 = inlined_call_operand.vmem [shape: f32[128,9], index: 3, kind: input, shape index: {}]
  %s4 = inlined_call_operand.vmem [shape: f32[1,9], index: 4, kind: input, shape index: {}]
  %s5 = inlined_call_operand.hbm [shape: f32[8,9], index: 5, kind: output, shape index: {}]
  %s6 = sld [smem:[#allocation0]]
  $region30: #{tpu_custom_call.1} parent=0
    _
  %s8 = ssub.s32 1, %s6
  %s9 = scalar_select 0, %s8, %s6
  $region1: #{tpu_custom_call.1} parent=0
    #allocation2 [shape = 'u8[4096]{0}', space=vmem, size = 0x1000, scoped, tag = 'output window, operand 0, single buffered']
    #allocation3 [shape = 's32[1]{0}', space=sflag, size = 0x4, scoped, tag = 'scoped memory for tpu_custom_call.1']
    %10 = vsyncpa [#allocation3], 0
    // Predicated region
    $region2: #{tpu_custom_call.1} parent=1 // pred_check
      _
    $region3: #{tpu_custom_call.1} parent=1 // pred_check_branch
      %12 = sbr.rel (0) target = $region5
    $region4: #{tpu_custom_call.1} parent=1 // pred_region
      _
    $region5: #{tpu_custom_call.1} parent=1 // pred_fallthru
      _
    // Predicated region
    $region6: #{tpu_custom_call.1} parent=1 // pred_check
      _
    $region7: #{tpu_custom_call.1} parent=1 // pred_check_branch
      %14 = sbr.rel (0) target = $region9
    $region8: #{tpu_custom_call.1} parent=1 // pred_region
      _
    $region9: #{tpu_custom_call.1} parent=1 // pred_fallthru
      _
    // Predicated region
    $region10: #{tpu_custom_call.1} parent=1 // pred_check
      _
    $region11: #{tpu_custom_call.1} parent=1 // pred_check_branch
      %16 = sbr.rel (0) target = $region13
    $region12: #{tpu_custom_call.1} parent=1 // pred_region
      _
    $region13: #{tpu_custom_call.1} parent=1 // pred_fallthru
      _
    // Predicated region
    $region14: #{tpu_custom_call.1} parent=1 // pred_check
      _
    $region15: #{tpu_custom_call.1} parent=1 // pred_check_branch
      %18 = sbr.rel (0) target = $region17
    $region16: #{tpu_custom_call.1} parent=1 // pred_region
      _
    $region17: #{tpu_custom_call.1} parent=1 // pred_fallthru
      _
    // Predicated region
    $region18: #{tpu_custom_call.1} parent=1 // pred_check
      _
    $region19: #{tpu_custom_call.1} parent=1 // pred_check_branch
      %20 = sbr.rel (0) target = $region21
    $region20: #{tpu_custom_call.1} parent=1 // pred_region
      _
    $region21: #{tpu_custom_call.1} parent=1 // pred_fallthru
      _
    %v21 = vld [vmem:[%s0] sm:$0xff]
    %v22 = vld [vmem:[%s1] sm:$0xff]
    %v23 = vld [vmem:[%s1 + $0x8] sm:$0xff]
    %v24 = vld [vmem:[%s1 + $0x10] sm:$0xff]
    %v25 = vld [vmem:[%s1 + $0x18] sm:$0xff]
    %v26 = vld [vmem:[%s1 + $0x20] sm:$0xff]
    %v27 = vld [vmem:[%s2] sm:$0x1]
    %v29 = vperm.slane %v27, 0
    %vm31 = vcmask 326656
    %v33 = vsel %vm31, %v21, 0
    %35 = vmatpush.msra.mxu0 0.0
    %36 = vmatpush.msra.mxu0 0.0
    %37 = vmatpush.msra.mxu0 0.0
    %38 = vmatpush.msra.mxu0 0.0
    %39 = vmatpush.msra.mxu0 0.0
    %40 = vmatpush.msra.mxu0 0.0
    %41 = vmatpush.msra.mxu0 0.0
    %42 = vmatpush.msra.mxu0 0.0
    %43 = vmatpush.msra.mxu0 0.0
    %44 = vmatpush.msra.mxu0 0.0
    %45 = vmatpush.msra.mxu0 0.0
    %46 = vmatpush.msra.mxu0 %v26
    %47 = vmatpush.msra.mxu0 %v25
    %48 = vmatpush.msra.mxu0 %v24
    %49 = vmatpush.msra.mxu0 %v23
    %50 = vmatpush.msra.mxu0 %v22
    %51 = vmatmul.f32.gmra.mxu0 %v33
    %v52 = vpop.f32.mrf.mxu0
    %v53 = vadd.f32 %v29, %v52
    %54 = vdwg.mxu0
    %v55 = vmax.f32 %v53, 0.0
    %v56 = vld [vmem:[%s3] sm:$0xff]
    %v57 = vld [vmem:[%s3 + $0x8] sm:$0xff]
    %v58 = vld [vmem:[%s3 + $0x10] sm:$0xff]
    %v59 = vld [vmem:[%s3 + $0x18] sm:$0xff]
    %v60 = vld [vmem:[%s3 + $0x20] sm:$0xff]
    %v61 = vld [vmem:[%s3 + $0x28] sm:$0xff]
    %v62 = vld [vmem:[%s3 + $0x30] sm:$0xff]
    %v63 = vld [vmem:[%s3 + $0x38] sm:$0xff]
    %v64 = vld [vmem:[%s3 + $0x40] sm:$0xff]
    %v65 = vld [vmem:[%s3 + $0x48] sm:$0xff]
    %v66 = vld [vmem:[%s3 + $0x50] sm:$0xff]
    %v67 = vld [vmem:[%s3 + $0x58] sm:$0xff]
    %v68 = vld [vmem:[%s3 + $0x60] sm:$0xff]
    %v69 = vld [vmem:[%s3 + $0x68] sm:$0xff]
    %v70 = vld [vmem:[%s3 + $0x70] sm:$0xff]
    %v71 = vld [vmem:[%s3 + $0x78] sm:$0xff]
    %v72 = vld [vmem:[%s4] sm:$0x1]
    %v74 = vperm.slane %v72, 0
    %76 = vmatpush.msra.mxu0 %v71
    %77 = vmatpush.msra.mxu0 %v70
    %78 = vmatpush.msra.mxu0 %v69
    %79 = vmatpush.msra.mxu0 %v68
    %80 = vmatpush.msra.mxu0 %v67
    %81 = vmatpush.msra.mxu0 %v66
    %82 = vmatpush.msra.mxu0 %v65
    %83 = vmatpush.msra.mxu0 %v64
    %84 = vmatpush.msra.mxu0 %v63
    %85 = vmatpush.msra.mxu0 %v62
    %86 = vmatpush.msra.mxu0 %v61
    %87 = vmatpush.msra.mxu0 %v60
    %88 = vmatpush.msra.mxu0 %v59
    %89 = vmatpush.msra.mxu0 %v58
    %90 = vmatpush.msra.mxu0 %v57
    %91 = vmatpush.msra.mxu0 %v56
    %92 = vmatmul.f32.gmra.mxu0 %v55
    %v93 = vpop.f32.mrf.mxu0
    %v94 = vadd.f32 %v74, %v93
    %95 = vdwg.mxu0
    %vm96 = vcmask 72704
    %97 = vst.msk [vmem:[#allocation2] sm:$0xff] %vm96, %v94
    // Predicated region
    $region22: #{tpu_custom_call.1} parent=1 // pred_check
      _
    $region23: #{tpu_custom_call.1} parent=1 // pred_check_branch
      %99 = sbr.rel (0) target = $region25
    $region24: #{tpu_custom_call.1} parent=1 // pred_region
      %101 = vsyncadd [#allocation3], 0
      %s103 = sshll.u32 [#allocation2], 4
      %s104 = int_to_ptr.vmem [resolvable:$true] %s103
      %s105 = sshll.u32 %s5, 4
      %s106 = int_to_ptr.hbm [resolvable:$true] %s105
      %108 = dma.vmem_to_hbm [thread:$0]  %s104, 128, %s106, [#allocation3]
    $region25: #{tpu_custom_call.1} parent=1 // pred_fallthru
      _
    // Predicated region
    $region26: #{tpu_custom_call.1} parent=1 // pred_check
      _
    $region27: #{tpu_custom_call.1} parent=1 // pred_check_branch
      %110 = sbr.rel (0) target = $region29
    $region28: #{tpu_custom_call.1} parent=1 // pred_region
      %112 = dma.done [#allocation3], 128
    $region29: #{tpu_custom_call.1} parent=1 // pred_fallthru
      _
    %113 = vsyncpa [#allocation3], 1

</llo_original>
